<compile_context>
chip_gen: v7x
topology: tpu7x:2x2x1
jax: 0.10.0
libtpu: 0.0.40
codegen_flags: <defaults>
</compile_context>

<pallas_src>
import jax
import jax.numpy as jnp
from jax import lax
from jax.experimental import pallas as pl
from jax.experimental.pallas import tpu as pltpu

K1 = 3 * 27   # layer-1 contraction width (81)
H1 = 128      # layer-1 output width
H2P = 128     # layer-2 output width, padded (real: 64)
NP = 128      # layer-3 / softmax width, padded (real: 27)
N_OUT = 27    # real number of classes
VMEM_LIMIT_BYTES = 48 * 1024 * 1024


def _round_up(n, m):
    return ((n + m - 1) // m) * m


def _mlp_tail(x_bf16, w1_ref, b1_ref, w2_ref, b2_ref, w3_ref, b3_ref, o_ref):
    """Shared fused MLP + softmax body.  x_bf16: (TB, 81) bf16."""
    h1 = jnp.dot(x_bf16, w1_ref[...], preferred_element_type=jnp.float32) + b1_ref[...]
    h1 = jnp.maximum(h1, 0.0).astype(jnp.bfloat16)                        # (TB, 128)
    h2 = jnp.dot(h1, w2_ref[...], preferred_element_type=jnp.float32) + b2_ref[...]
    h2 = jnp.maximum(h2, 0.0).astype(jnp.bfloat16)                        # (TB, 128), cols >= 64 are 0
    z = jnp.dot(h2, w3_ref[...], preferred_element_type=jnp.float32) + b3_ref[...]
    # Padded columns have a -1e30 f32 bias -> exp underflows to 0; keep z,
    # max and exp in f32 (v5e-safe, avoids -inf edge cases).
    m = jnp.max(z, axis=-1, keepdims=True)
    e = jnp.exp(z - m)
    inv = pl.reciprocal(jnp.sum(e, axis=-1, keepdims=True), approx=True)
    o_ref[...] = (e * inv).astype(o_ref.dtype)                            # lane-dense 128-wide store


def _dense_kernel(x_ref, w1_ref, b1_ref, w2_ref, b2_ref, w3_ref, b3_ref, o_ref):
    x = x_ref[...].astype(jnp.bfloat16)                                   # (TB, 81), cast in VMEM
    _mlp_tail(x, w1_ref, b1_ref, w2_ref, b2_ref, w3_ref, b3_ref, o_ref)


def _index_kernel(idx_ref, w1_ref, b1_ref, w2_ref, b2_ref, w3_ref, b3_ref, o_ref):
    idx = idx_ref[...]                                                    # (TB, 3) int32
    tb = idx.shape[0]
    lanes = lax.broadcasted_iota(jnp.int32, (tb, K1), 1)                  # (TB, 81)
    hit = ((lanes == idx[:, 0:1])
           | (lanes == idx[:, 1:2] + 27)
           | (lanes == idx[:, 2:3] + 54))
    x = hit.astype(jnp.bfloat16)                                          # one-hot built on the VPU
    _mlp_tail(x, w1_ref, b1_ref, w2_ref, b2_ref, w3_ref, b3_ref, o_ref)


def prepare_params(params):
    """One-time pad/cast of params into the kernel layout (hoisted out of the
    per-call path).  params: (w1, b1, w2, b2, w3, b3), weights already stored
    transposed as (in_features, out_features), f32."""
    w1, b1, w2, b2, w3, b3 = params
    w1p = w1.astype(jnp.bfloat16)                                              # (81, 128)
    b1p = b1.reshape(1, H1).astype(jnp.float32)
    w2p = jnp.zeros((H1, H2P), jnp.bfloat16).at[:, :64].set(w2.astype(jnp.bfloat16))
    b2p = jnp.zeros((1, H2P), jnp.float32).at[:, :64].set(
        b2.reshape(1, 64).astype(jnp.float32))
    w3p = jnp.zeros((H2P, NP), jnp.bfloat16).at[:64, :N_OUT].set(w3.astype(jnp.bfloat16))
    b3p = jnp.full((1, NP), -1e30, jnp.float32).at[:, :N_OUT].set(
        b3.reshape(1, N_OUT).astype(jnp.float32))
    return (w1p, b1p, w2p, b2p, w3p, b3p)


def _call(kernel, lead, lead_width, prepped, tb):
    B = lead.shape[0]
    tb_eff = min(_round_up(max(B, 1), 8), _round_up(tb, 8))
    grid = (pl.cdiv(B, tb_eff),)     # ragged last block is masked; no batch-pad pass
    resident = lambda r, c: pl.BlockSpec((r, c), lambda i: (0, 0))
    w1p, b1p, w2p, b2p, w3p, b3p = prepped
    out = pl.pallas_call(
        kernel,
        out_shape=jax.ShapeDtypeStruct((B, NP), jnp.bfloat16),
        grid=grid,
        in_specs=[
            pl.BlockSpec((tb_eff, lead_width), lambda i: (i, 0)),   # pipelined batch tile
            resident(K1, H1), resident(1, H1),                      # W1, b1 (VMEM-resident)
            resident(H1, H2P), resident(1, H2P),                    # W2, b2
            resident(H2P, NP), resident(1, NP),                     # W3, b3
        ],
        out_specs=pl.BlockSpec((tb_eff, NP), lambda i: (i, 0)),
        compiler_params=pltpu.CompilerParams(
            dimension_semantics=("parallel",),
            vmem_limit_bytes=VMEM_LIMIT_BYTES),
    )(lead, w1p, b1p, w2p, b2p, w3p, b3p)
    # TODO(synk): A/B a direct (B, 27) out_shape (masked vst, no slice pass) vs this padded store.
    return out[:, :N_OUT].astype(jnp.float32)


def three_gram_forward(x, prepped_params, tb=4096):
    """x: (B, 3, 27) float32 (dense / one-hot).  Returns softmax probs (B, 27) f32."""
    x2d = x.reshape(x.shape[0], K1)          # free reshape; streamed as raw f32
    return _call(_dense_kernel, x2d, K1, prepped_params, tb)


def three_gram_forward_from_indices(idx, prepped_params, tb=4096):
    """idx: (B, 3) int32 context indices in [0, 27).  ~27x less input HBM traffic."""
    return _call(_index_kernel, idx.astype(jnp.int32), 3, prepped_params, tb)


def init_params(key):
    """Deterministic init mimicking nn.Linear default U(-1/sqrt(fan_in), 1/sqrt(fan_in)).
    Weights stored already transposed: (in_features, out_features), f32."""
    def linear(key, fan_in, fan_out):
        kw, kb = jax.random.split(key)
        bound = 1.0 / jnp.sqrt(fan_in)
        w = jax.random.uniform(kw, (fan_in, fan_out), jnp.float32, -bound, bound)
        b = jax.random.uniform(kb, (1, fan_out), jnp.float32, -bound, bound)
        return w, b

    k1, k2, k3 = jax.random.split(key, 3)
    w1, b1 = linear(k1, 3 * 27, 128)
    w2, b2 = linear(k2, 128, 64)
    w3, b3 = linear(k3, 64, 27)
    return (w1, b1, w2, b2, w3, b3)


def _reference_forward(x, params):
    """Pure-JAX f32 reference matching the PyTorch module."""
    w1, b1, w2, b2, w3, b3 = params
    x2d = x.reshape(x.shape[0], -1)
    h1 = jnp.maximum(x2d @ w1 + b1, 0.0)
    h2 = jnp.maximum(h1 @ w2 + b2, 0.0)
    z = h2 @ w3 + b3
    return jax.nn.softmax(z, axis=-1)


if __name__ == "__main__":
    key = jax.random.PRNGKey(0)
    kx, kp, kx2 = jax.random.split(key, 3)

    params = init_params(kp)
    prepped = prepare_params(params)          # hoisted one-time weight prep

    # Synthetic 3-gram one-hot input: batch=8, 3 context chars, alphabet=27.
    B = 8
    idx = jax.random.randint(kx, (B, 3), 0, 27)
    x = jax.nn.one_hot(idx, 27, dtype=jnp.float32)        # (B, 3, 27)

    out_dense = three_gram_forward(x, prepped)
    out_index = three_gram_forward_from_indices(idx, prepped)
    jax.block_until_ready((out_dense, out_index))

    ref = _reference_forward(x, params)

    assert out_dense.shape == (B, N_OUT) and out_index.shape == (B, N_OUT)
    # bf16 matmul operands / bf16 output / approx reciprocal -> loose tolerances.
    assert jnp.allclose(jnp.sum(out_dense, axis=1), 1.0, atol=1e-2)
    assert jnp.max(jnp.abs(out_dense - ref)) < 2e-2
    assert jnp.max(jnp.abs(out_index - ref)) < 2e-2

    # Ragged-batch path: B not a multiple of the 8-row sublane granule
    # (exercises the masked partial last block, no wrapper padding).
    B2 = 19
    idx2 = jax.random.randint(kx2, (B2, 3), 0, 27)
    x2 = jax.nn.one_hot(idx2, 27, dtype=jnp.float32)
    out2 = three_gram_forward(x2, prepped)
    jax.block_until_ready(out2)
    ref2 = _reference_forward(x2, params)
    assert out2.shape == (B2, N_OUT)
    assert jnp.max(jnp.abs(out2 - ref2)) < 2e-2

    print("KERNEL_OK")
</pallas_src>

<mosaic_0001>
module attributes {stable_mosaic.version = 11 : i64} {
  func.func @_dense_kernel(%arg0: i32, %arg1: memref<8x81xf32, #tpu.memory_space<vmem>>, %arg2: memref<81x128xbf16, #tpu.memory_space<vmem>>, %arg3: memref<1x128xf32, #tpu.memory_space<vmem>>, %arg4: memref<128x128xbf16, #tpu.memory_space<vmem>>, %arg5: memref<1x128xf32, #tpu.memory_space<vmem>>, %arg6: memref<128x128xbf16, #tpu.memory_space<vmem>>, %arg7: memref<1x128xf32, #tpu.memory_space<vmem>>, %arg8: memref<8x128xbf16, #tpu.memory_space<vmem>>) attributes {dimension_semantics = [#tpu.dimension_semantics<parallel>], iteration_bounds = array<i64: 1>, scalar_prefetch = 0 : i64, scratch_operands = 0 : i64, tpu.core_type = #tpu.core_type<tc>, window_params = [{transform_indices = @transform_0, window_bounds = array<i64: 8, 81>}, {pipeline_mode = #tpu.pipeline_mode<synchronous>, transform_indices = @transform_1, window_bounds = array<i64: 81, 128>}, {pipeline_mode = #tpu.pipeline_mode<synchronous>, transform_indices = @transform_2, window_bounds = array<i64: 1, 128>}, {pipeline_mode = #tpu.pipeline_mode<synchronous>, transform_indices = @transform_3, window_bounds = array<i64: 128, 128>}, {pipeline_mode = #tpu.pipeline_mode<synchronous>, transform_indices = @transform_4, window_bounds = array<i64: 1, 128>}, {pipeline_mode = #tpu.pipeline_mode<synchronous>, transform_indices = @transform_5, window_bounds = array<i64: 128, 128>}, {pipeline_mode = #tpu.pipeline_mode<synchronous>, transform_indices = @transform_6, window_bounds = array<i64: 1, 128>}, {transform_indices = @transform_7, window_bounds = array<i64: 8, 128>}]} {
    %c0 = arith.constant 0 : index
    %c0_0 = arith.constant 0 : index
    %0 = vector.load %arg1[%c0, %c0_0] : memref<8x81xf32, #tpu.memory_space<vmem>>, vector<8x81xf32>
    %1 = arith.truncf %0 : vector<8x81xf32> to vector<8x81xbf16>
    %c0_1 = arith.constant 0 : index
    %c0_2 = arith.constant 0 : index
    %2 = vector.load %arg2[%c0_1, %c0_2] : memref<81x128xbf16, #tpu.memory_space<vmem>>, vector<81x128xbf16>
    %cst = arith.constant dense<0.000000e+00> : vector<8x128xf32>
    %3 = tpu.matmul %1, %2, %cst {dimension_numbers = #tpu.dot_dimension_numbers<[1], [0], [0], [1], [0, 0, 1, 1], [], []>} : vector<8x81xbf16>, vector<81x128xbf16>, vector<8x128xf32> -> vector<8x128xf32>
    %c0_3 = arith.constant 0 : index
    %c0_4 = arith.constant 0 : index
    %4 = vector.load %arg3[%c0_3, %c0_4] : memref<1x128xf32, #tpu.memory_space<vmem>>, vector<1x128xf32>
    %5 = vector.broadcast %4 : vector<1x128xf32> to vector<8x128xf32>
    %6 = arith.addf %3, %5 : vector<8x128xf32>
    %cst_5 = arith.constant 0.000000e+00 : f32
    %7 = vector.broadcast %cst_5 : f32 to vector<8x128xf32>
    %8 = arith.maximumf %6, %7 : vector<8x128xf32>
    %9 = arith.truncf %8 : vector<8x128xf32> to vector<8x128xbf16>
    %c0_6 = arith.constant 0 : index
    %c0_7 = arith.constant 0 : index
    %10 = vector.load %arg4[%c0_6, %c0_7] : memref<128x128xbf16, #tpu.memory_space<vmem>>, vector<128x128xbf16>
    %cst_8 = arith.constant dense<0.000000e+00> : vector<8x128xf32>
    %11 = tpu.matmul %9, %10, %cst_8 {dimension_numbers = #tpu.dot_dimension_numbers<[1], [0], [0], [1], [0, 0, 1, 1], [], []>} : vector<8x128xbf16>, vector<128x128xbf16>, vector<8x128xf32> -> vector<8x128xf32>
    %c0_9 = arith.constant 0 : index
    %c0_10 = arith.constant 0 : index
    %12 = vector.load %arg5[%c0_9, %c0_10] : memref<1x128xf32, #tpu.memory_space<vmem>>, vector<1x128xf32>
    %13 = vector.broadcast %12 : vector<1x128xf32> to vector<8x128xf32>
    %14 = arith.addf %11, %13 : vector<8x128xf32>
    %cst_11 = arith.constant 0.000000e+00 : f32
    %15 = vector.broadcast %cst_11 : f32 to vector<8x128xf32>
    %16 = arith.maximumf %14, %15 : vector<8x128xf32>
    %17 = arith.truncf %16 : vector<8x128xf32> to vector<8x128xbf16>
    %c0_12 = arith.constant 0 : index
    %c0_13 = arith.constant 0 : index
    %18 = vector.load %arg6[%c0_12, %c0_13] : memref<128x128xbf16, #tpu.memory_space<vmem>>, vector<128x128xbf16>
    %cst_14 = arith.constant dense<0.000000e+00> : vector<8x128xf32>
    %19 = tpu.matmul %17, %18, %cst_14 {dimension_numbers = #tpu.dot_dimension_numbers<[1], [0], [0], [1], [0, 0, 1, 1], [], []>} : vector<8x128xbf16>, vector<128x128xbf16>, vector<8x128xf32> -> vector<8x128xf32>
    %c0_15 = arith.constant 0 : index
    %c0_16 = arith.constant 0 : index
    %20 = vector.load %arg7[%c0_15, %c0_16] : memref<1x128xf32, #tpu.memory_space<vmem>>, vector<1x128xf32>
    %21 = vector.broadcast %20 : vector<1x128xf32> to vector<8x128xf32>
    %22 = arith.addf %19, %21 : vector<8x128xf32>
    %cst_17 = arith.constant dense<0xFF800000> : vector<8xf32>
    %23 = vector.multi_reduction <maximumf>, %22, %cst_17 [1] : vector<8x128xf32> to vector<8xf32>
    %24 = vector.shape_cast %23 : vector<8xf32> to vector<8x1xf32>
    %25 = vector.broadcast %24 : vector<8x1xf32> to vector<8x128xf32>
    %26 = arith.subf %22, %25 : vector<8x128xf32>
    %27 = math.exp %26 : vector<8x128xf32>
    %cst_18 = arith.constant dense<0.000000e+00> : vector<8xf32>
    %28 = vector.multi_reduction <add>, %27, %cst_18 [1] : vector<8x128xf32> to vector<8xf32>
    %29 = vector.shape_cast %28 : vector<8xf32> to vector<8x1xf32>
    %30 = tpu.reciprocal %29 {approx = true} : vector<8x1xf32> -> vector<8x1xf32>
    %31 = vector.broadcast %30 : vector<8x1xf32> to vector<8x128xf32>
    %32 = arith.mulf %27, %31 : vector<8x128xf32>
    %33 = arith.truncf %32 : vector<8x128xf32> to vector<8x128xbf16>
    %c0_19 = arith.constant 0 : index
    %c0_20 = arith.constant 0 : index
    %34 = vector.load %arg8[%c0_19, %c0_20] : memref<8x128xbf16, #tpu.memory_space<vmem>>, vector<8x128xbf16>
    tpu.vector_store %arg8[%c0_19, %c0_20], %33 {strides = array<i32>} : memref<8x128xbf16, #tpu.memory_space<vmem>>, vector<8x128xbf16>,
    return
  }
  func.func @transform_0(%arg0: i32) -> (i32, i32) {
    %c0_i32 = arith.constant 0 : i32
    %c0_i32_0 = arith.constant 0 : i32
    return %arg0, %c0_i32 : i32, i32
  }
  func.func @transform_1(%arg0: i32) -> (i32, i32) {
    %c0_i32 = arith.constant 0 : i32
    %c0_i32_0 = arith.constant 0 : i32
    %c0_i32_1 = arith.constant 0 : i32
    return %c0_i32, %c0_i32_0 : i32, i32
  }
  func.func @transform_2(%arg0: i32) -> (i32, i32) {
    %c0_i32 = arith.constant 0 : i32
    %c0_i32_0 = arith.constant 0 : i32
    %c0_i32_1 = arith.constant 0 : i32
    return %c0_i32, %c0_i32_0 : i32, i32
  }
  func.func @transform_3(%arg0: i32) -> (i32, i32) {
    %c0_i32 = arith.constant 0 : i32
    %c0_i32_0 = arith.constant 0 : i32
    %c0_i32_1 = arith.constant 0 : i32
    return %c0_i32, %c0_i32_0 : i32, i32
  }
  func.func @transform_4(%arg0: i32) -> (i32, i32) {
    %c0_i32 = arith.constant 0 : i32
    %c0_i32_0 = arith.constant 0 : i32
    %c0_i32_1 = arith.constant 0 : i32
    return %c0_i32, %c0_i32_0 : i32, i32
  }
  func.func @transform_5(%arg0: i32) -> (i32, i32) {
    %c0_i32 = arith.constant 0 : i32
    %c0_i32_0 = arith.constant 0 : i32
    %c0_i32_1 = arith.constant 0 : i32
    return %c0_i32, %c0_i32_0 : i32, i32
  }
  func.func @transform_6(%arg0: i32) -> (i32, i32) {
    %c0_i32 = arith.constant 0 : i32
    %c0_i32_0 = arith.constant 0 : i32
    %c0_i32_1 = arith.constant 0 : i32
    return %c0_i32, %c0_i32_0 : i32, i32
  }
  func.func @transform_7(%arg0: i32) -> (i32, i32) {
    %c0_i32 = arith.constant 0 : i32
    %c0_i32_0 = arith.constant 0 : i32
    return %arg0, %c0_i32 : i32, i32
  }
}

</mosaic_0001>

<llo_original>
// kernel: tpu_custom_call.1
$region0: #{tpu_custom_call.1}
  #allocation0 [shape = 'u32[]', space=smem, size = 0x4, offset = 0x4, fixed_abs, tag = 'smem constant byte address 0x4 - core index']
  #allocation1 [shape = 'u32[144,128]{1,0:T(1,128)}', space=vmem, size = 0x12000, scoped, tag = 'internal scratch']
  %s0 = inlined_call_operand.hbm [shape: f32[8,81], index: 0, kind: input, shape index: {}]
  %s1 = inlined_call_operand.hbm [shape: bf16[81,128], index: 1, kind: input, shape index: {}]
  %s2 = inlined_call_operand.vmem [shape: f32[1,128], index: 2, kind: input, shape index: {}]
  %s3 = inlined_call_operand.hbm [shape: bf16[128,128], index: 3, kind: input, shape index: {}]
  %s4 = inlined_call_operand.vmem [shape: f32[1,128], index: 4, kind: input, shape index: {}]
  %s5 = inlined_call_operand.hbm [shape: bf16[128,128], index: 5, kind: input, shape index: {}]
  %s6 = inlined_call_operand.vmem [shape: f32[1,128], index: 6, kind: input, shape index: {}]
  %s7 = inlined_call_operand.hbm [shape: bf16[8,128], index: 7, kind: output, shape index: {}]
  %s8 = sld [smem:[#allocation0]]
  $region54: #{tpu_custom_call.1} parent=0
    _
  %s10 = ssub.s32 1, %s8
  %s11 = scalar_select 0, %s10, %s8
  $region1: #{tpu_custom_call.1} parent=0
    #allocation2 [shape = 'u8[4096]{0}', space=vmem, size = 0x1000, scoped, tag = 'input window, operand 0, single buffered']
    #allocation3 [shape = 's32[1]{0}', space=sflag, size = 0x4, scoped, tag = 'scoped memory for tpu_custom_call.1']
    #allocation4 [shape = 's32[1]{0}', space=sflag, size = 0x4, scoped, tag = 'scoped memory for tpu_custom_call.1']
    #allocation5 [shape = 'u8[22528]{0}', space=vmem, size = 0x5800, scoped, tag = 'input window, operand 1, single buffered']
    #allocation6 [shape = 's32[1]{0}', space=sflag, size = 0x4, scoped, tag = 'scoped memory for tpu_custom_call.1']
    #allocation7 [shape = 'u8[32768]{0}', space=vmem, size = 0x8000, scoped, tag = 'input window, operand 3, single buffered']
    #allocation8 [shape = 'u8[32768]{0}', space=vmem, size = 0x8000, scoped, tag = 'input window, operand 5, single buffered']
    #allocation9 [shape = 's32[1]{0}', space=sflag, size = 0x4, scoped, tag = 'scoped memory for tpu_custom_call.1']
    #allocation10 [shape = 'u8[2048]{0}', space=vmem, size = 0x800, scoped, tag = 'output window, operand 0, single buffered']
    %12 = vsyncpa [#allocation3], 0
    %13 = vsyncpa [#allocation6], 0
    %14 = vsyncpa [#allocation9], 0
    %15 = vsyncpa [#allocation4], 0
    // Predicated region
    $region2: #{tpu_custom_call.1} parent=1 // pred_check
      _
    $region3: #{tpu_custom_call.1} parent=1 // pred_check_branch
      %17 = sbr.rel (0) target = $region5
    $region4: #{tpu_custom_call.1} parent=1 // pred_region
      %s19 = ssub.s32 128, 128
      %20 = vsyncadd [#allocation3], %s19
      %s22 = sshll.u32 [#allocation2], 4
      %s23 = int_to_ptr.vmem [resolvable:$true] %s22
      %25 = dma.hbm_to_vmem [thread:$0]  %s0, 128, %s23, [#allocation3]
    $region5: #{tpu_custom_call.1} parent=1 // pred_fallthru
      _
    // Predicated region
    $region6: #{tpu_custom_call.1} parent=1 // pred_check
      _
    $region7: #{tpu_custom_call.1} parent=1 // pred_check_branch
      %27 = sbr.rel (0) target = $region9
    $region8: #{tpu_custom_call.1} parent=1 // pred_region
      %s29 = ssub.s32 704, 704
      %30 = vsyncadd [#allocation6], %s29
      %s31 = sshll.u32 [#allocation5], 4
      %s32 = int_to_ptr.vmem [resolvable:$true] %s31
      %37 = dma.hbm_to_vmem [thread:$0]  %s1, 704, %s32, [#allocation6], 64, 64, 4
    $region9: #{tpu_custom_call.1} parent=1 // pred_fallthru
      _
    // Predicated region
    $region10: #{tpu_custom_call.1} parent=1 // pred_check
      _
    $region11: #{tpu_custom_call.1} parent=1 // pred_check_branch
      %39 = sbr.rel (0) target = $region13
    $region12: #{tpu_custom_call.1} parent=1 // pred_region
      _
    $region13: #{tpu_custom_call.1} parent=1 // pred_fallthru
      _
    // Predicated region
    $region14: #{tpu_custom_call.1} parent=1 // pred_check
      _
    $region15: #{tpu_custom_call.1} parent=1 // pred_check_branch
      %41 = sbr.rel (0) target = $region17
    $region16: #{tpu_custom_call.1} parent=1 // pred_region
      %s43 = ssub.s32 1024, 1024
      %44 = vsyncadd [#allocation6], %s43
      %s45 = sshll.u32 [#allocation7], 4
      %s46 = int_to_ptr.vmem [resolvable:$true] %s45
      %51 = dma.hbm_to_vmem [thread:$0]  %s3, 1024, %s46, [#allocation6], 64, 64, 4
    $region17: #{tpu_custom_call.1} parent=1 // pred_fallthru
      _
    // Predicated region
    $region18: #{tpu_custom_call.1} parent=1 // pred_check
      _
    $region19: #{tpu_custom_call.1} parent=1 // pred_check_branch
      %53 = sbr.rel (0) target = $region21
    $region20: #{tpu_custom_call.1} parent=1 // pred_region
      _
    $region21: #{tpu_custom_call.1} parent=1 // pred_fallthru
      _
    // Predicated region
    $region22: #{tpu_custom_call.1} parent=1 // pred_check
      _
    $region23: #{tpu_custom_call.1} parent=1 // pred_check_branch
      %55 = sbr.rel (0) target = $region25
    $region24: #{tpu_custom_call.1} parent=1 // pred_region
      %s57 = ssub.s32 1024, 1024
      %58 = vsyncadd [#allocation9], %s57
      %s59 = sshll.u32 [#allocation8], 4
      %s60 = int_to_ptr.vmem [resolvable:$true] %s59
      %65 = dma.hbm_to_vmem [thread:$0]  %s5, 1024, %s60, [#allocation9], 64, 64, 4
    $region25: #{tpu_custom_call.1} parent=1 // pred_fallthru
      _
    // Predicated region
    $region26: #{tpu_custom_call.1} parent=1 // pred_check
      _
    $region27: #{tpu_custom_call.1} parent=1 // pred_check_branch
      %67 = sbr.rel (0) target = $region29
    $region28: #{tpu_custom_call.1} parent=1 // pred_region
      _
    $region29: #{tpu_custom_call.1} parent=1 // pred_fallthru
      _
    // Predicated region
    $region30: #{tpu_custom_call.1} parent=1 // pred_check
      _
    $region31: #{tpu_custom_call.1} parent=1 // pred_check_branch
      %69 = sbr.rel (0) target = $region33
    $region32: #{tpu_custom_call.1} parent=1 // pred_region
      %70 = dma.done [#allocation3], 128
    $region33: #{tpu_custom_call.1} parent=1 // pred_fallthru
      _
    // Predicated region
    $region34: #{tpu_custom_call.1} parent=1 // pred_check
      _
    $region35: #{tpu_custom_call.1} parent=1 // pred_check_branch
      %72 = sbr.rel (0) target = $region37
    $region36: #{tpu_custom_call.1} parent=1 // pred_region
      %73 = dma.done [#allocation6], 704
    $region37: #{tpu_custom_call.1} parent=1 // pred_fallthru
      _
    // Predicated region
    $region38: #{tpu_custom_call.1} parent=1 // pred_check
      _
    $region39: #{tpu_custom_call.1} parent=1 // pred_check_branch
      %75 = sbr.rel (0) target = $region41
    $region40: #{tpu_custom_call.1} parent=1 // pred_region
      %76 = dma.done [#allocation6], 1024
    $region41: #{tpu_custom_call.1} parent=1 // pred_fallthru
      _
    // Predicated region
    $region42: #{tpu_custom_call.1} parent=1 // pred_check
      _
    $region43: #{tpu_custom_call.1} parent=1 // pred_check_branch
      %78 = sbr.rel (0) target = $region45
    $region44: #{tpu_custom_call.1} parent=1 // pred_region
      %79 = dma.done [#allocation9], 1024
    $region45: #{tpu_custom_call.1} parent=1 // pred_fallthru
      _
    %v81 = vld [vmem:[#allocation2] sm:$0xff]
    %v82 = vpack.c.bf16 %v81, %v81
    %v83 = vld [vmem:[#allocation5] sm:$0xf]
    %v84 = vld [vmem:[#allocation5 + $0x4] sm:$0xf]
    %v85 = vld [vmem:[#allocation5 + $0x8] sm:$0xf]
    %v86 = vld [vmem:[#allocation5 + $0xc] sm:$0xf]
    %v87 = vld [vmem:[#allocation5 + $0x10] sm:$0xf]
    %v88 = vld [vmem:[#allocation5 + $0x14] sm:$0xf]
    %v89 = vld [vmem:[#allocation5 + $0x18] sm:$0xf]
    %v90 = vld [vmem:[#allocation5 + $0x1c] sm:$0xf]
    %v91 = vld [vmem:[#allocation5 + $0x20] sm:$0xf]
    %v92 = vld [vmem:[#allocation5 + $0x24] sm:$0xf]
    %v93 = vld [vmem:[#allocation5 + $0x28] sm:$0x1]
    %v94 = vld [vmem:[%s2] sm:$0x1]
    %v96 = vlaneseq
    %v97 = vshrl.u32 %v96, 7
    %v98 = vsub.s32 0, %v97
    %v99 = vrot.slane %v94, %v98
    %v112 = vunpack.c.l.b16 %v83
    %v113 = vunpack.c.l.b16 %v84
    %v114 = vunpack.c.l.b16 %v85
    %v115 = vunpack.c.l.b16 %v86
    %v116 = vunpack.c.l.b16 %v87
    %v117 = vunpack.c.l.b16 %v88
    %v118 = vunpack.c.l.b16 %v89
    %v119 = vunpack.c.l.b16 %v90
    %v120 = vunpack.c.l.b16 %v91
    %v121 = vunpack.c.l.b16 %v92
    %v122 = vunpack.c.l.b16 %v93
    %v123 = vpack.c.b16 %v113, %v112
    %v124 = vpack.c.b16 %v115, %v114
    %v125 = vpack.c.b16 %v117, %v116
    %v126 = vpack.c.b16 %v119, %v118
    %v127 = vpack.c.b16 %v121, %v120
    %v128 = vpack.c.b16 %v122, %v122
    %vm134 = vcmask 662528
    %v136 = vsel %vm134, %v82, 0
    %vm138 = vcmask 1040384
    %v139 = vsel 0, 4294967295, 65535
    %v140 = vsel %vm138, %v139, 0
    %v142 = vand.u32 %v128, %v140
    %144 = vmatprep.subr.bf16.mxu0 0
    %145 = vmatpush1.bf16.msra.mxu0 %v123
    %146 = vmatprep.subr.bf16.mxu0 0
    %147 = vmatpush1.bf16.msra.mxu0 %v124
    %148 = vmatprep.subr.bf16.mxu0 0
    %149 = vmatpush1.bf16.msra.mxu0 %v125
    %150 = vmatprep.subr.bf16.mxu0 0
    %151 = vmatpush1.bf16.msra.mxu0 %v126
    %152 = vmatprep.subr.bf16.mxu0 0
    %153 = vmatpush1.bf16.msra.mxu0 %v127
    %154 = vmatprep.subr.bf16.mxu0 0
    %155 = vmatpush1.bf16.msra.mxu0 %v142
    %156 = vmatprep.subr.bf16.mxu0 0
    %157 = vmatpush1.bf16.msra.mxu0 0
    %158 = vmatprep.subr.bf16.mxu0 0
    %159 = vmatpush1.bf16.msra.mxu0 0
    %160 = vmatprep.subr.bf16.mxu0 0
    %161 = vmatpush1.bf16.msra.mxu0 0
    %162 = vmatprep.subr.bf16.mxu0 0
    %163 = vmatpush1.bf16.msra.mxu0 0
    %164 = vmatprep.subr.bf16.mxu0 0
    %165 = vmatpush1.bf16.msra.mxu0 0
    %166 = vmatprep.subr.bf16.mxu0 0
    %167 = vmatpush1.bf16.msra.mxu0 0
    %168 = vmatprep.subr.bf16.mxu0 0
    %169 = vmatpush1.bf16.msra.mxu0 0
    %170 = vmatprep.subr.bf16.mxu0 0
    %171 = vmatpush1.bf16.msra.mxu0 0
    %172 = vmatprep.subr.bf16.mxu0 0
    %173 = vmatpush1.bf16.msra.mxu0 0
    %174 = vmatprep.subr.bf16.mxu0 0
    %175 = vmatpush1.bf16.msra.mxu0 0
    %176 = vmatprep.mubr.bf16.mxu0 0
    %177 = vmatmul.mubr.bf16.gmra.mrb[0].mxu0 %v136
    %v178 = vpop.f32.mrb[0].mxu0
    %v179 = vadd.f32 %v99, %v178
    %v180 = vpop.f32.mrb[0].mxu0
    %v181 = vpop.f32.mrb[0].mxu0
    %v182 = vpop.f32.mrb[0].mxu0
    %183 = vdwg.mxu0
    %v184 = vmax.f32 %v179, 0.0
    %v185 = vpack.c.bf16 %v184, %v184
    %v186 = vld [vmem:[#allocation7] sm:$0xf]
    %v187 = vld [vmem:[#allocation7 + $0x4] sm:$0xf]
    %v188 = vld [vmem:[#allocation7 + $0x8] sm:$0xf]
    %v189 = vld [vmem:[#allocation7 + $0xc] sm:$0xf]
    %v190 = vld [vmem:[#allocation7 + $0x10] sm:$0xf]
    %v191 = vld [vmem:[#allocation7 + $0x14] sm:$0xf]
    %v192 = vld [vmem:[#allocation7 + $0x18] sm:$0xf]
    %v193 = vld [vmem:[#allocation7 + $0x1c] sm:$0xf]
    %v194 = vld [vmem:[#allocation7 + $0x20] sm:$0xf]
    %v195 = vld [vmem:[#allocation7 + $0x24] sm:$0xf]
    %v196 = vld [vmem:[#allocation7 + $0x28] sm:$0xf]
    %v197 = vld [vmem:[#allocation7 + $0x2c] sm:$0xf]
    %v198 = vld [vmem:[#allocation7 + $0x30] sm:$0xf]
    %v199 = vld [vmem:[#allocation7 + $0x34] sm:$0xf]
    %v200 = vld [vmem:[#allocation7 + $0x38] sm:$0xf]
    %v201 = vld [vmem:[#allocation7 + $0x3c] sm:$0xf]
    %v202 = vld [vmem:[%s4] sm:$0x1]
    %v204 = vlaneseq
    %v205 = vshrl.u32 %v204, 7
    %v206 = vsub.s32 0, %v205
    %v207 = vrot.slane %v202, %v206
    %v225 = vunpack.c.l.b16 %v186
    %v226 = vunpack.c.l.b16 %v187
    %v227 = vunpack.c.l.b16 %v188
    %v228 = vunpack.c.l.b16 %v189
    %v229 = vunpack.c.l.b16 %v190
    %v230 = vunpack.c.l.b16 %v191
    %v231 = vunpack.c.l.b16 %v192
    %v232 = vunpack.c.l.b16 %v193
    %v233 = vunpack.c.l.b16 %v194
    %v234 = vunpack.c.l.b16 %v195
    %v235 = vunpack.c.l.b16 %v196
    %v236 = vunpack.c.l.b16 %v197
    %v237 = vunpack.c.l.b16 %v198
    %v238 = vunpack.c.l.b16 %v199
    %v239 = vunpack.c.l.b16 %v200
    %v240 = vunpack.c.l.b16 %v201
    %v241 = vpack.c.b16 %v226, %v225
    %v242 = vpack.c.b16 %v228, %v227
    %v243 = vpack.c.b16 %v230, %v229
    %v244 = vpack.c.b16 %v232, %v231
    %v245 = vpack.c.b16 %v234, %v233
    %v246 = vpack.c.b16 %v236, %v235
    %v247 = vpack.c.b16 %v238, %v237
    %v248 = vpack.c.b16 %v240, %v239
    %257 = vmatprep.subr.bf16.mxu0 0
    %258 = vmatpush1.bf16.msra.mxu0 %v241
    %259 = vmatprep.subr.bf16.mxu0 0
    %260 = vmatpush1.bf16.msra.mxu0 %v242
    %261 = vmatprep.subr.bf16.mxu0 0
    %262 = vmatpush1.bf16.msra.mxu0 %v243
    %263 = vmatprep.subr.bf16.mxu0 0
    %264 = vmatpush1.bf16.msra.mxu0 %v244
    %265 = vmatprep.subr.bf16.mxu0 0
    %266 = vmatpush1.bf16.msra.mxu0 %v245
    %267 = vmatprep.subr.bf16.mxu0 0
    %268 = vmatpush1.bf16.msra.mxu0 %v246
    %269 = vmatprep.subr.bf16.mxu0 0
    %270 = vmatpush1.bf16.msra.mxu0 %v247
    %271 = vmatprep.subr.bf16.mxu0 0
    %272 = vmatpush1.bf16.msra.mxu0 %v248
    %273 = vmatprep.subr.bf16.mxu0 0
    %274 = vmatpush1.bf16.msra.mxu0 0
    %275 = vmatprep.subr.bf16.mxu0 0
    %276 = vmatpush1.bf16.msra.mxu0 0
    %277 = vmatprep.subr.bf16.mxu0 0
    %278 = vmatpush1.bf16.msra.mxu0 0
    %279 = vmatprep.subr.bf16.mxu0 0
    %280 = vmatpush1.bf16.msra.mxu0 0
    %281 = vmatprep.subr.bf16.mxu0 0
    %282 = vmatpush1.bf16.msra.mxu0 0
    %283 = vmatprep.subr.bf16.mxu0 0
    %284 = vmatpush1.bf16.msra.mxu0 0
    %285 = vmatprep.subr.bf16.mxu0 0
    %286 = vmatpush1.bf16.msra.mxu0 0
    %287 = vmatprep.subr.bf16.mxu0 0
    %288 = vmatpush1.bf16.msra.mxu0 0
    %289 = vmatprep.mubr.bf16.mxu0 0
    %290 = vmatmul.mubr.bf16.gmra.mrb[0].mxu0 %v185
    %v291 = vpop.f32.mrb[0].mxu0
    %v292 = vadd.f32 %v207, %v291
    %v293 = vpop.f32.mrb[0].mxu0
    %v294 = vpop.f32.mrb[0].mxu0
    %v295 = vpop.f32.mrb[0].mxu0
    %296 = vdwg.mxu0
    %v297 = vmax.f32 %v292, 0.0
    %v298 = vpack.c.bf16 %v297, %v297
    %v299 = vld [vmem:[#allocation8] sm:$0xf]
    %v300 = vld [vmem:[#allocation8 + $0x4] sm:$0xf]
    %v301 = vld [vmem:[#allocation8 + $0x8] sm:$0xf]
    %v302 = vld [vmem:[#allocation8 + $0xc] sm:$0xf]
    %v303 = vld [vmem:[#allocation8 + $0x10] sm:$0xf]
    %v304 = vld [vmem:[#allocation8 + $0x14] sm:$0xf]
    %v305 = vld [vmem:[#allocation8 + $0x18] sm:$0xf]
    %v306 = vld [vmem:[#allocation8 + $0x1c] sm:$0xf]
    %v307 = vld [vmem:[#allocation8 + $0x20] sm:$0xf]
    %v308 = vld [vmem:[#allocation8 + $0x24] sm:$0xf]
    %v309 = vld [vmem:[#allocation8 + $0x28] sm:$0xf]
    %v310 = vld [vmem:[#allocation8 + $0x2c] sm:$0xf]
    %v311 = vld [vmem:[#allocation8 + $0x30] sm:$0xf]
    %v312 = vld [vmem:[#allocation8 + $0x34] sm:$0xf]
    %v313 = vld [vmem:[#allocation8 + $0x38] sm:$0xf]
    %v314 = vld [vmem:[#allocation8 + $0x3c] sm:$0xf]
    %v315 = vld [vmem:[%s6] sm:$0x1]
    %v317 = vlaneseq
    %v318 = vshrl.u32 %v317, 7
    %v319 = vsub.s32 0, %v318
    %v320 = vrot.slane %v315, %v319
    %v338 = vunpack.c.l.b16 %v299
    %v339 = vunpack.c.l.b16 %v300
    %v340 = vunpack.c.l.b16 %v301
    %v341 = vunpack.c.l.b16 %v302
    %v342 = vunpack.c.l.b16 %v303
    %v343 = vunpack.c.l.b16 %v304
    %v344 = vunpack.c.l.b16 %v305
    %v345 = vunpack.c.l.b16 %v306
    %v346 = vunpack.c.l.b16 %v307
    %v347 = vunpack.c.l.b16 %v308
    %v348 = vunpack.c.l.b16 %v309
    %v349 = vunpack.c.l.b16 %v310
    %v350 = vunpack.c.l.b16 %v311
    %v351 = vunpack.c.l.b16 %v312
    %v352 = vunpack.c.l.b16 %v313
    %v353 = vunpack.c.l.b16 %v314
    %v354 = vpack.c.b16 %v339, %v338
    %v355 = vpack.c.b16 %v341, %v340
    %v356 = vpack.c.b16 %v343, %v342
    %v357 = vpack.c.b16 %v345, %v344
    %v358 = vpack.c.b16 %v347, %v346
    %v359 = vpack.c.b16 %v349, %v348
    %v360 = vpack.c.b16 %v351, %v350
    %v361 = vpack.c.b16 %v353, %v352
    %370 = vmatprep.subr.bf16.mxu0 0
    %371 = vmatpush1.bf16.msra.mxu0 %v354
    %372 = vmatprep.subr.bf16.mxu0 0
    %373 = vmatpush1.bf16.msra.mxu0 %v355
    %374 = vmatprep.subr.bf16.mxu0 0
    %375 = vmatpush1.bf16.msra.mxu0 %v356
    %376 = vmatprep.subr.bf16.mxu0 0
    %377 = vmatpush1.bf16.msra.mxu0 %v357
    %378 = vmatprep.subr.bf16.mxu0 0
    %379 = vmatpush1.bf16.msra.mxu0 %v358
    %380 = vmatprep.subr.bf16.mxu0 0
    %381 = vmatpush1.bf16.msra.mxu0 %v359
    %382 = vmatprep.subr.bf16.mxu0 0
    %383 = vmatpush1.bf16.msra.mxu0 %v360
    %384 = vmatprep.subr.bf16.mxu0 0
    %385 = vmatpush1.bf16.msra.mxu0 %v361
    %386 = vmatprep.subr.bf16.mxu0 0
    %387 = vmatpush1.bf16.msra.mxu0 0
    %388 = vmatprep.subr.bf16.mxu0 0
    %389 = vmatpush1.bf16.msra.mxu0 0
    %390 = vmatprep.subr.bf16.mxu0 0
    %391 = vmatpush1.bf16.msra.mxu0 0
    %392 = vmatprep.subr.bf16.mxu0 0
    %393 = vmatpush1.bf16.msra.mxu0 0
    %394 = vmatprep.subr.bf16.mxu0 0
    %395 = vmatpush1.bf16.msra.mxu0 0
    %396 = vmatprep.subr.bf16.mxu0 0
    %397 = vmatpush1.bf16.msra.mxu0 0
    %398 = vmatprep.subr.bf16.mxu0 0
    %399 = vmatpush1.bf16.msra.mxu0 0
    %400 = vmatprep.subr.bf16.mxu0 0
    %401 = vmatpush1.bf16.msra.mxu0 0
    %402 = vmatprep.mubr.bf16.mxu0 0
    %403 = vmatmul.mubr.bf16.gmra.mrb[0].mxu0 %v298
    %v404 = vpop.f32.mrb[0].mxu0
    %v405 = vadd.f32 %v320, %v404
    %v406 = vpop.f32.mrb[0].mxu0
    %v407 = vpop.f32.mrb[0].mxu0
    %v408 = vpop.f32.mrb[0].mxu0
    %409 = vdwg.mxu0
    %410 = vmax.xlane.f32.xlu0 %v405
    %v411 = vpop.xlane.xlu0 %410
    %v412 = vsub.f32 %v405, %v411
    %v413 = vmul.f32 %v412, 1.442695
    %v414 = vpow.pop %v413
    %415 = vadd.xlane.f32.xlu0 %v414
    %v416 = vpop.xlane.xlu0 %415
    %v417 = vrcp.pop %v416
    %v418 = vmul.f32 %v414, %v417
    %v419 = vpack.c.bf16 %v418, %v418
    %420 = vst [vmem:[#allocation10] sm:$0xf] %v419
    // Predicated region
    $region46: #{tpu_custom_call.1} parent=1 // pred_check
      _
    $region47: #{tpu_custom_call.1} parent=1 // pred_check_branch
      %422 = sbr.rel (0) target = $region49
    $region48: #{tpu_custom_call.1} parent=1 // pred_region
      %s424 = ssub.s32 64, 64
      %425 = vsyncadd [#allocation4], %s424
      %s427 = sshll.u32 [#allocation10], 4
      %s428 = int_to_ptr.vmem [resolvable:$true] %s427
      %430 = dma.vmem_to_hbm [thread:$0]  %s428, 64, %s7, [#allocation4]
    $region49: #{tpu_custom_call.1} parent=1 // pred_fallthru
      _
    // Predicated region
    $region50: #{tpu_custom_call.1} parent=1 // pred_check
      _
    $region51: #{tpu_custom_call.1} parent=1 // pred_check_branch
      %432 = sbr.rel (0) target = $region53
    $region52: #{tpu_custom_call.1} parent=1 // pred_region
      %433 = dma.done [#allocation4], 64
    $region53: #{tpu_custom_call.1} parent=1 // pred_fallthru
      _
    %434 = vsyncpa [#allocation3], 1
    %435 = vsyncpa [#allocation6], 1
    %436 = vsyncpa [#allocation9], 1
    %437 = vsyncpa [#allocation4], 1

</llo_original>
